<compile_context>
chip_gen: v6e
topology: v6e:2x2x1
jax: 0.10.0
libtpu: 0.0.40
codegen_flags: <defaults>
</compile_context>

<pallas_src>
import math

import jax
import jax.numpy as jnp
import numpy as np
from jax.experimental import pallas as pl
from jax.experimental.pallas import tpu as pltpu


def _round_up(x, m):
    return ((x + m - 1) // m) * m


# ----------------------------------------------------------------------------
# Device VMEM budget (review: derive limits from hardware, don't hard-code).
# ----------------------------------------------------------------------------
_VMEM_CACHE = {}


def _vmem_limit_bytes():
    if "limit" not in _VMEM_CACHE:
        cap = 64 * 1024 * 1024                       # conservative default (v7x/TC)
        try:
            info = pltpu.get_tpu_info()
            cap = int(getattr(info, "vmem_capacity_bytes", cap) or cap)
        except Exception:
            pass
        limit = int(min(0.65 * cap, 100 * 1024 * 1024))
        _VMEM_CACHE["limit"] = max(32 * 1024 * 1024, limit)
    return _VMEM_CACHE["limit"]


# ----------------------------------------------------------------------------
# Pallas kernel: tiled linear (x @ w + b), bf16 MXU operands, f32 accumulation.
# ----------------------------------------------------------------------------
def _linear_kernel(x_ref, w_ref, b_ref, o_ref, acc_ref):
    @pl.when(pl.program_id(2) == 0)
    def _init():
        acc_ref[...] = jnp.zeros_like(acc_ref)

    acc_ref[...] += jnp.dot(x_ref[...].astype(jnp.bfloat16),
                            w_ref[...].astype(jnp.bfloat16),
                            preferred_element_type=jnp.float32)

    @pl.when(pl.program_id(2) == pl.num_programs(2) - 1)
    def _finalize():
        o_ref[...] = (acc_ref[...] + b_ref[...]).astype(o_ref.dtype)


def linear_pallas(x, w, b, *, out_dtype=None, vmem_limit=None,
                  tm_cap=512, tn_cap=512, tk_cap=512):
    M, K = x.shape
    Kw, N = w.shape
    assert K == Kw
    out_dtype = out_dtype if out_dtype is not None else x.dtype
    vmem_limit = vmem_limit if vmem_limit is not None else _vmem_limit_bytes()

    # Row tiling: as few, as large tiles as possible without big padding waste.
    nt = -(-M // tm_cap)
    TM = _round_up(-(-M // nt), 8)
    M_pad = nt * TM
    if M_pad != M:
        x = jnp.pad(x, ((0, M_pad - M), (0, 0)))

    # Column / reduction tiling: 128-aligned tiles when large, else full extent.
    if N % 128 == 0 and N > tn_cap:
        TN = tn_cap if N % tn_cap == 0 else 128
    else:
        TN = N
    if K % 128 == 0 and K > tk_cap:
        TK = tk_cap if K % tk_cap == 0 else 128
    else:
        TK = K

    grid = (M_pad // TM, N // TN, K // TK)
    out = pl.pallas_call(
        _linear_kernel,
        out_shape=jax.ShapeDtypeStruct((M_pad, N), out_dtype),
        grid=grid,
        in_specs=[
            pl.BlockSpec((TM, TK), lambda i, j, k: (i, k)),
            pl.BlockSpec((TK, TN), lambda i, j, k: (k, j)),
            pl.BlockSpec((1, TN), lambda i, j, k: (0, j)),
        ],
        out_specs=pl.BlockSpec((TM, TN), lambda i, j, k: (i, j)),
        scratch_shapes=[pltpu.VMEM((TM, TN), jnp.float32)],
        compiler_params=pltpu.CompilerParams(
            dimension_semantics=("parallel", "parallel", "arbitrary"),
            vmem_limit_bytes=vmem_limit),
    )(x, w.astype(jnp.bfloat16), b.reshape(1, N).astype(jnp.float32))
    return out[:M] if M_pad != M else out


# ----------------------------------------------------------------------------
# Pallas kernel: halo-tiled neighborhood attention (all heads per grid step).
# ----------------------------------------------------------------------------
def _make_na_kernel(*, NH, D, C, TR, W, H_pad, HALO, hk):
    TQ = TR * W
    NK = HALO * W

    def kernel(q_ref, qkv_hbm, scale_ref, bias_ref, o_ref, halo_buf, sem):
        t = pl.program_id(0)
        b = pl.program_id(1)
        # Image-row halo whose keys/values any query row of this tile can see
        # (same formula as the host-side scale/bias tables); it is a contiguous
        # chunk of the flattened (H*W, 3C) qkv activation -> one DMA, no unfold.
        r_lo = jnp.clip(t * TR - hk, 0, H_pad - HALO)
        cp = pltpu.make_async_copy(
            qkv_hbm.at[b, pl.ds(r_lo * W, NK)], halo_buf, sem.at[0])
        cp.start()
        # TODO(synk): double-buffer the halo fetch across grid steps so this DMA
        # overlaps the previous tile's compute.
        cp.wait()

        q_all = q_ref[0]                                  # (TQ, C) bf16, q pre-scaled
        kv = halo_buf[...]                                # (NK, 3C) bf16
        scl = scale_ref[0]                                # (TQ, NK) f32 gauss scale

        for h in range(NH):                               # small static unroll
            qh = q_all[:, h * D:(h + 1) * D]              # (TQ, D)
            kh = kv[:, C + h * D:C + (h + 1) * D]         # (NK, D)
            vh = kv[:, 2 * C + h * D:2 * C + (h + 1) * D]
            # MXU: q @ k^T (contract last dims of both -> no transpose op)
            s = jax.lax.dot_general(
                qh, kh, (((1,), (1,)), ((), ())),
                preferred_element_type=jnp.float32)       # (TQ, NK)
            # (qk + rpb) * gauss, neighborhood mask folded into scale/bias
            logits = s * scl + bias_ref[0, h]
            m = jnp.max(logits, axis=-1, keepdims=True)
            p = jnp.exp(logits - m)
            denom = jnp.sum(p, axis=-1, keepdims=True)
            p = p * pl.reciprocal(denom, approx=True)     # EUP slot
            o = jnp.dot(p.astype(vh.dtype), vh,
                        preferred_element_type=jnp.float32)   # MXU (TQ, D)
            # per-head lane-slice store; no per-head concatenate
            o_ref[0, :, h * D:(h + 1) * D] = o.astype(o_ref.dtype)

    return kernel


def neighborhood_attention_pallas(q_arr, qkv_img, scale_pair, bias_pair, *,
                                  W, TR, ks, num_heads, head_dim, vmem_limit):
    B, HWp, C = q_arr.shape
    C3 = qkv_img.shape[-1]
    T, TQ, NK = scale_pair.shape
    NH, D = num_heads, head_dim
    HALO = NK // W
    H_pad = HWp // W
    hk = (ks - 1) // 2
    assert C3 == 3 * C and NH * D == C
    assert TQ == TR * W and NK == HALO * W and T * TQ == HWp

    kernel = _make_na_kernel(NH=NH, D=D, C=C, TR=TR, W=W,
                             H_pad=H_pad, HALO=HALO, hk=hk)
    return pl.pallas_call(
        kernel,
        out_shape=jax.ShapeDtypeStruct((B, HWp, C), q_arr.dtype),
        grid=(T, B),                    # batch innermost: scale/bias blocks reused
        in_specs=[
            pl.BlockSpec((1, TQ, C), lambda t, b: (b, t, 0)),           # q tile
            pl.BlockSpec(memory_space=pl.ANY),                          # qkv in HBM
            pl.BlockSpec((1, TQ, NK), lambda t, b: (t, 0, 0)),          # gauss scale
            pl.BlockSpec((1, NH, TQ, NK), lambda t, b: (t, 0, 0, 0)),   # rpb*gauss+mask
        ],
        out_specs=pl.BlockSpec((1, TQ, C), lambda t, b: (b, t, 0)),
        scratch_shapes=[
            pltpu.VMEM((NK, C3), qkv_img.dtype),      # packed bf16 qkv halo tile
            pltpu.SemaphoreType.DMA((1,)),
        ],
        compiler_params=pltpu.CompilerParams(
            dimension_semantics=("parallel", "parallel"),
            vmem_limit_bytes=vmem_limit),
    )(q_arr, qkv_img, scale_pair, bias_pair)


def _pick_na_row_tile(H, W, C, NH, ks, budget, override=None):
    """Image rows per NA grid step (query tile = rows * W pixels)."""

    def vmem_need(tr):
        tq = tr * W
        halo = H if tr >= H else (tr + ks - 1)
        nk = halo * W
        # double-buffered pipelined blocks: q(bf16), scale(f32), bias(f32,NH), out(bf16)
        blk = 2 * (2 * tq * C + 4 * tq * nk + 4 * NH * tq * nk + 2 * tq * C)
        scr = 2 * nk * 3 * C                  # bf16 qkv halo scratch (single buffer)
        tmp = 8 * 4 * tq * nk                 # f32 logits / softmax working set
        return blk + scr + tmp

    if override is not None:
        tr = min(int(override), H)
    elif vmem_need(H) <= budget:
        tr = H                                 # single tile covers the image
    else:
        step = 8 // math.gcd(W, 8)
        tr = max(step, (min(H - 1, 64) // step) * step)
        while tr > step and vmem_need(tr) > budget:
            tr -= step
    if tr >= H:
        return H
    step = 8 // math.gcd(W, 8)                 # keep (rows * W) % 8 == 0 when tiled
    return min(H, max(step, (tr // step) * step))


# ----------------------------------------------------------------------------
# GA module: params + forward
# ----------------------------------------------------------------------------
def init_ga_params(key, dim, num_heads, kernel_size, sc=0.1):
    k1, k2, k3, k4, k5 = jax.random.split(key, 5)
    p = {}
    p["w_qkv"] = 0.1 * jax.random.normal(k1, (dim, 3 * dim), jnp.float32)
    p["b_qkv"] = 0.1 * jax.random.normal(k2, (3 * dim,), jnp.float32)
    p["rpb"] = jnp.clip(
        0.02 * jax.random.normal(
            k3, (num_heads, 2 * kernel_size - 1, 2 * kernel_size - 1),
            jnp.float32),
        -2.0, 2.0)
    p["w_proj"] = 0.1 * jax.random.normal(k4, (dim, dim), jnp.float32)
    p["b_proj"] = 0.1 * jax.random.normal(k5, (dim,), jnp.float32)
    p["lr_m"] = jnp.ones((kernel_size, kernel_size), jnp.float32) * sc * 0.5
    return p


def ga_forward(x, params, *, num_heads, kernel_size, dilation=1,
               sigma=9.0, sc=0.1, use_pallas=True, na_row_tile=None):
    # TODO(synk): dilation > 1 (dilated NATTEN window arithmetic, as used by
    # GCLBlock's GA(kernel_size=13, dilation=3)) is not implemented.
    assert dilation == 1
    B, Hp, Wp, C = x.shape
    NH = num_heads
    HD = C // NH
    scale = HD ** -0.5
    ks = kernel_size
    hk = (ks - 1) // 2
    window = ks * dilation

    pad_b = max(0, window - Hp)
    pad_r = max(0, window - Wp)
    if pad_b or pad_r:
        x = jnp.pad(x, ((0, 0), (0, pad_b), (0, pad_r), (0, 0)))
    _, H, W, _ = x.shape
    HW = H * W
    K2 = ks * ks

    # ---- NATTEN per-axis window / rpb starts + gaussian modulation ----
    def starts(length):
        idx = jnp.arange(length)
        win = jnp.clip(idx - hk, 0, length - ks)
        pb = (hk
              + jnp.where(idx < hk, hk - idx, 0)
              + jnp.where(idx + hk >= length, length - idx - 1 - hk, 0))
        return win, pb

    win_i, pb_i = starts(H)
    win_j, pb_j = starts(W)
    crd = jnp.linspace(0.0, ks - 1.0, ks)
    gauss = jnp.exp(-((crd[None, :] - hk) ** 2 + (crd[:, None] - hk) ** 2)
                    / (2.0 * sigma ** 2))
    ker_S = gauss + params["lr_m"] / sc                       # (ks, ks)

    x_flat = x.reshape(B * HW, C)

    if not use_pallas:
        # Pure-JAX f32 reference (matches the PyTorch module semantics).
        qkv = x_flat @ params["w_qkv"] + params["b_qkv"]
        qkv = qkv.reshape(B, H, W, 3, NH, HD).transpose(3, 0, 4, 1, 2, 5)
        q, k, v = qkv[0] * scale, qkv[1], qkv[2]
        off = jnp.arange(ks)
        row_idx = win_i[:, None] + off[None, :]
        col_idx = win_j[:, None] + off[None, :]
        r_idx = pb_i[:, None] + off[None, :]
        c_idx = pb_j[:, None] + off[None, :]
        rpb = params["rpb"]
        rg = jnp.take(rpb, r_idx.reshape(-1), axis=1).reshape(NH, H, ks, 2 * ks - 1)
        rg = jnp.take(rg, c_idx.reshape(-1), axis=3).reshape(NH, H, ks, W, ks)
        rpb_g = rg.transpose(0, 1, 3, 2, 4).reshape(NH, HW, K2)
        ker_s = ker_S.reshape(K2)

        def unfold(t):
            g1 = jnp.take(t, row_idx.reshape(-1), axis=2).reshape(B, NH, H, ks, W, HD)
            g2 = jnp.take(g1, col_idx.reshape(-1), axis=4).reshape(B, NH, H, ks, W, ks, HD)
            return g2.transpose(0, 1, 2, 4, 3, 5, 6).reshape(B, NH, HW, K2, HD)

        k_unf, v_unf = unfold(k), unfold(v)
        q_f = q.reshape(B, NH, HW, HD)
        logits = jnp.einsum("bnqd,bnqkd->bnqk", q_f, k_unf) + rpb_g[None]
        logits = logits * ker_s[None, None, None, :]
        p = jax.nn.softmax(logits, axis=-1)
        out = jnp.einsum("bnqk,bnqkd->bnqd", p, v_unf)
        out = out.reshape(B, NH, H, W, HD).transpose(0, 2, 3, 1, 4).reshape(B, H, W, C)
    else:
        vmem_limit = _vmem_limit_bytes()

        # ---- qkv projection: q-scale folded into the q columns, bf16 stream out ----
        col_scale = jnp.concatenate(
            [jnp.full((C,), scale, jnp.float32), jnp.ones((2 * C,), jnp.float32)])
        qkv = linear_pallas(x_flat, params["w_qkv"] * col_scale[None, :],
                            params["b_qkv"] * col_scale,
                            out_dtype=jnp.bfloat16, vmem_limit=vmem_limit)
        qkv_img = qkv.reshape(B, HW, 3 * C)      # heads contiguous on the lane axis

        # ---- row-tile geometry (halo attention, no ks^2 K/V unfold) ----
        TR = _pick_na_row_tile(H, W, C, NH, ks, vmem_limit // 3, override=na_row_tile)
        T = -(-H // TR)
        H_pad = T * TR
        HALO = min(H_pad, TR + ks - 1)
        q_arr = qkv_img[:, :, :C]                # q columns (already scaled)
        if H_pad != H:
            rows_pad = (H_pad - H) * W
            q_arr = jnp.pad(q_arr, ((0, 0), (0, rows_pad), (0, 0)))
            qkv_img = jnp.pad(qkv_img, ((0, 0), (0, rows_pad), (0, 0)))

        # ---- pairwise (query pixel, halo key pixel) gaussian scale and masked
        #      rpb bias implementing the NATTEN neighborhood (batch-independent)
        # TODO(synk): generate mask/bias on the fly inside the kernel for very
        # large feature maps (this table is O(NH * HW * halo) in HBM).
        q_rows = jnp.clip(jnp.arange(T * TR).reshape(T, TR), 0, H - 1)
        r_lo = jnp.clip(jnp.arange(T) * TR - hk, 0, H_pad - HALO)
        k_rows = r_lo[:, None] + jnp.arange(HALO)[None, :]             # (T, HALO)
        ki = k_rows[:, None, :] - win_i[q_rows][:, :, None]            # (T, TR, HALO)
        vi = (ki >= 0) & (ki < ks)
        ri = pb_i[q_rows][:, :, None] + ki
        kj = jnp.arange(W)[None, :] - win_j[:, None]                   # (Wq, Wk)
        vj = (kj >= 0) & (kj < ks)
        rj = pb_j[:, None] + kj
        ki_b = jnp.clip(ki, 0, ks - 1)[:, :, None, :, None]
        kj_b = jnp.clip(kj, 0, ks - 1)[None, None, :, None, :]
        ri_b = jnp.clip(ri, 0, 2 * ks - 2)[:, :, None, :, None]
        rj_b = jnp.clip(rj, 0, 2 * ks - 2)[None, None, :, None, :]
        valid = vi[:, :, None, :, None] & vj[None, None, :, None, :]   # (T,TR,Wq,HALO,Wk)
        ker_pair = jnp.take(ker_S.reshape(-1), ki_b * ks + kj_b, axis=0)
        scale_pair = jnp.where(valid, ker_pair, 0.0)
        scale_pair = scale_pair.reshape(T, TR * W, HALO * W).astype(jnp.float32)
        rpb_pair = jnp.take(params["rpb"].reshape(NH, -1),
                            ri_b * (2 * ks - 1) + rj_b, axis=1)        # (NH,T,TR,Wq,HALO,Wk)
        bias_pair = jnp.where(valid[None], rpb_pair * ker_pair[None], -1e9)
        bias_pair = bias_pair.transpose(1, 0, 2, 3, 4, 5)
        bias_pair = bias_pair.reshape(T, NH, TR * W, HALO * W).astype(jnp.float32)

        out = neighborhood_attention_pallas(
            q_arr, qkv_img, scale_pair, bias_pair,
            W=W, TR=TR, ks=ks, num_heads=NH, head_dim=HD,
            vmem_limit=vmem_limit)                        # (B, H_pad*W, C) bf16
        out = out[:, :HW, :].reshape(B, H, W, C)

    if pad_b or pad_r:
        out = out[:, :Hp, :Wp, :]

    # ---- output projection ----
    out_flat = out.reshape(B * Hp * Wp, C)
    if use_pallas:
        out = linear_pallas(out_flat, params["w_proj"], params["b_proj"],
                            out_dtype=jnp.float32, vmem_limit=_vmem_limit_bytes())
    else:
        out = out_flat @ params["w_proj"] + params["b_proj"]
    return out.reshape(B, Hp, Wp, C)


# ----------------------------------------------------------------------------
if __name__ == "__main__":
    base_key = jax.random.PRNGKey(0)

    def run_case(B, H, W, dim, num_heads, kernel_size, na_row_tile=None):
        kx, kp = jax.random.split(jax.random.fold_in(base_key, H * W))
        x = jax.random.normal(kx, (B, H, W, dim), jnp.float32)
        params = init_ga_params(kp, dim, num_heads, kernel_size)
        out = ga_forward(x, params, num_heads=num_heads, kernel_size=kernel_size,
                         use_pallas=True, na_row_tile=na_row_tile)
        out = jax.block_until_ready(out)
        assert out.shape == (B, H, W, dim)
        ref = ga_forward(x, params, num_heads=num_heads, kernel_size=kernel_size,
                         use_pallas=False)
        ref = jax.block_until_ready(ref)
        # bf16 MXU / bf16 activation streams vs an all-f32 reference.
        np.testing.assert_allclose(np.asarray(out), np.asarray(ref),
                                   rtol=2.5e-2, atol=2.5e-2)

    # single row-tile path
    run_case(B=2, H=13, W=13, dim=32, num_heads=4, kernel_size=5)
    # multi row-tile path (forced small tile -> halo DMA + padded-tile handling)
    run_case(B=2, H=17, W=17, dim=32, num_heads=4, kernel_size=5, na_row_tile=8)

    print("KERNEL_OK")
</pallas_src>

<mosaic_0001>
module attributes {stable_mosaic.version = 11 : i64} {
  func.func @_linear_kernel(%arg0: i32, %arg1: i32, %arg2: i32, %arg3: memref<344x32xf32, #tpu.memory_space<vmem>>, %arg4: memref<32x96xbf16, #tpu.memory_space<vmem>>, %arg5: memref<1x96xf32, #tpu.memory_space<vmem>>, %arg6: memref<344x96xbf16, #tpu.memory_space<vmem>>, %arg7: memref<344x96xf32, #tpu.memory_space<vmem>>) attributes {dimension_semantics = [#tpu.dimension_semantics<parallel>, #tpu.dimension_semantics<parallel>, #tpu.dimension_semantics<arbitrary>], iteration_bounds = array<i64: 1, 1, 1>, scalar_prefetch = 0 : i64, scratch_operands = 1 : i64, tpu.core_type = #tpu.core_type<tc>, window_params = [{transform_indices = @transform_0, window_bounds = array<i64: 344, 32>}, {transform_indices = @transform_1, window_bounds = array<i64: 32, 96>}, {transform_indices = @transform_2, window_bounds = array<i64: 1, 96>}, {transform_indices = @transform_3, window_bounds = array<i64: 344, 96>}]} {
    %c0_i32 = arith.constant 0 : i32
    %0 = arith.cmpi eq, %arg2, %c0_i32 : i32
    %1 = arith.extui %0 : i1 to i32
    %c0_i32_0 = arith.constant 0 : i32
    %2 = arith.cmpi ne, %1, %c0_i32_0 : i32
    scf.if %2 {
      %cst_10 = arith.constant 0.000000e+00 : f32
      %13 = vector.broadcast %cst_10 : f32 to vector<344x96xf32>
      %c0_11 = arith.constant 0 : index
      %c0_12 = arith.constant 0 : index
      %14 = vector.load %arg7[%c0_11, %c0_12] : memref<344x96xf32, #tpu.memory_space<vmem>>, vector<344x96xf32>
      tpu.vector_store %arg7[%c0_11, %c0_12], %13 {strides = array<i32>} : memref<344x96xf32, #tpu.memory_space<vmem>>, vector<344x96xf32>,
    } else {
    }
    %c0 = arith.constant 0 : index
    %c0_1 = arith.constant 0 : index
    %3 = vector.load %arg7[%c0, %c0_1] : memref<344x96xf32, #tpu.memory_space<vmem>>, vector<344x96xf32>
    %c0_2 = arith.constant 0 : index
    %c0_3 = arith.constant 0 : index
    %4 = vector.load %arg3[%c0_2, %c0_3] : memref<344x32xf32, #tpu.memory_space<vmem>>, vector<344x32xf32>
    %5 = arith.truncf %4 : vector<344x32xf32> to vector<344x32xbf16>
    %c0_4 = arith.constant 0 : index
    %c0_5 = arith.constant 0 : index
    %6 = vector.load %arg4[%c0_4, %c0_5] : memref<32x96xbf16, #tpu.memory_space<vmem>>, vector<32x96xbf16>
    %cst = arith.constant dense<0.000000e+00> : vector<344x96xf32>
    %7 = tpu.matmul %5, %6, %cst {dimension_numbers = #tpu.dot_dimension_numbers<[1], [0], [0], [1], [0, 0, 1, 1], [], []>} : vector<344x32xbf16>, vector<32x96xbf16>, vector<344x96xf32> -> vector<344x96xf32>
    %8 = arith.addf %3, %7 : vector<344x96xf32>
    %c0_6 = arith.constant 0 : index
    %c0_7 = arith.constant 0 : index
    %9 = vector.load %arg7[%c0_6, %c0_7] : memref<344x96xf32, #tpu.memory_space<vmem>>, vector<344x96xf32>
    tpu.vector_store %arg7[%c0_6, %c0_7], %8 {strides = array<i32>} : memref<344x96xf32, #tpu.memory_space<vmem>>, vector<344x96xf32>,
    %c0_i32_8 = arith.constant 0 : i32
    %10 = arith.cmpi eq, %arg2, %c0_i32_8 : i32
    %11 = arith.extui %10 : i1 to i32
    %c0_i32_9 = arith.constant 0 : i32
    %12 = arith.cmpi ne, %11, %c0_i32_9 : i32
    scf.if %12 {
      %c0_10 = arith.constant 0 : index
      %c0_11 = arith.constant 0 : index
      %13 = vector.load %arg7[%c0_10, %c0_11] : memref<344x96xf32, #tpu.memory_space<vmem>>, vector<344x96xf32>
      %c0_12 = arith.constant 0 : index
      %c0_13 = arith.constant 0 : index
      %14 = vector.load %arg5[%c0_12, %c0_13] : memref<1x96xf32, #tpu.memory_space<vmem>>, vector<1x96xf32>
      %15 = vector.broadcast %14 : vector<1x96xf32> to vector<344x96xf32>
      %16 = arith.addf %13, %15 : vector<344x96xf32>
      %17 = arith.truncf %16 : vector<344x96xf32> to vector<344x96xbf16>
      %c0_14 = arith.constant 0 : index
      %c0_15 = arith.constant 0 : index
      %18 = vector.load %arg6[%c0_14, %c0_15] : memref<344x96xbf16, #tpu.memory_space<vmem>>, vector<344x96xbf16>
      tpu.vector_store %arg6[%c0_14, %c0_15], %17 {strides = array<i32>} : memref<344x96xbf16, #tpu.memory_space<vmem>>, vector<344x96xbf16>,
    } else {
    }
    return
  }
  func.func @transform_0(%arg0: i32, %arg1: i32, %arg2: i32) -> (i32, i32) {
    %c0_i32 = arith.constant 0 : i32
    return %arg0, %arg2 : i32, i32
  }
  func.func @transform_1(%arg0: i32, %arg1: i32, %arg2: i32) -> (i32, i32) {
    %c0_i32 = arith.constant 0 : i32
    return %arg2, %arg1 : i32, i32
  }
  func.func @transform_2(%arg0: i32, %arg1: i32, %arg2: i32) -> (i32, i32) {
    %c0_i32 = arith.constant 0 : i32
    %c0_i32_0 = arith.constant 0 : i32
    return %c0_i32, %arg1 : i32, i32
  }
  func.func @transform_3(%arg0: i32, %arg1: i32, %arg2: i32) -> (i32, i32) {
    %c0_i32 = arith.constant 0 : i32
    return %arg0, %arg1 : i32, i32
  }
}

</mosaic_0001>

<llo_original>
// kernel: tpu_custom_call.1
$region0: #{tpu_custom_call.1}
  #allocation0 [shape = 'u32[]', space=smem, size = 0x4, offset = 0x4, fixed_abs, tag = 'smem constant byte address 0x4 - core index']
  #allocation1 [shape = 'u32[144,128]{1,0:T(1,128)}', space=vmem, size = 0x12000, scoped, tag = 'internal scratch']
  #allocation2 [shape = 'f32[344,96]{1,0:T(8,128)}', space=vmem, size = 0x2b000, scoped, tag = 'scratch operand']
  %s0 = inlined_call_operand.vmem [shape: f32[344,32], index: 0, kind: input, shape index: {}]
  %s1 = inlined_call_operand.vmem [shape: bf16[32,96], index: 1, kind: input, shape index: {}]
  %s2 = inlined_call_operand.vmem [shape: f32[1,96], index: 2, kind: input, shape index: {}]
  %s3 = inlined_call_operand.vmem [shape: bf16[344,96], index: 3, kind: output, shape index: {}]
  %s4 = sld [smem:[#allocation0]]
  $region30: #{tpu_custom_call.1} parent=0
    _
  %s6 = ssub.s32 1, %s4
  %s7 = scalar_select 0, %s6, %s4
  // Predicated region
  $region2: #{tpu_custom_call.1} parent=0 // pred_check
    _
  $region3: #{tpu_custom_call.1} parent=0 // pred_check_branch
    %9 = sbr.rel (0) target = $region5
  $region4: #{tpu_custom_call.1} parent=0 // pred_region
    _
  $region5: #{tpu_custom_call.1} parent=0 // pred_fallthru
    _
  // Predicated region
  $region6: #{tpu_custom_call.1} parent=0 // pred_check
    _
  $region7: #{tpu_custom_call.1} parent=0 // pred_check_branch
    %11 = sbr.rel (0) target = $region9
  $region8: #{tpu_custom_call.1} parent=0 // pred_region
    _
  $region9: #{tpu_custom_call.1} parent=0 // pred_fallthru
    _
  // Predicated region
  $region10: #{tpu_custom_call.1} parent=0 // pred_check
    _
  $region11: #{tpu_custom_call.1} parent=0 // pred_check_branch
    %13 = sbr.rel (0) target = $region13
  $region12: #{tpu_custom_call.1} parent=0 // pred_region
    _
  $region13: #{tpu_custom_call.1} parent=0 // pred_fallthru
    _
  %p15 = scmp.eq.s32.totalorder 0, 0
  // Predicated region
  $region14: #{tpu_custom_call.1} parent=0 // pred_check
    %p16 = pneg %p15
  $region15: #{tpu_custom_call.1} parent=0 // pred_check_branch
    %18 = sbr.rel (%p16) target = $region17
  $region16: #{tpu_custom_call.1} parent=0 // pred_region
    %vm19 = vcmask 785408
    %20 = vst.msk [vmem:[#allocation2] sm:$0xff] %vm19, 0.0
    %21 = vst.msk [vmem:[#allocation2 + $0x8] sm:$0xff] %vm19, 0.0
    %22 = vst.msk [vmem:[#allocation2 + $0x10] sm:$0xff] %vm19, 0.0
    %23 = vst.msk [vmem:[#allocation2 + $0x18] sm:$0xff] %vm19, 0.0
    %24 = vst.msk [vmem:[#allocation2 + $0x20] sm:$0xff] %vm19, 0.0
    %25 = vst.msk [vmem:[#allocation2 + $0x28] sm:$0xff] %vm19, 0.0
    %26 = vst.msk [vmem:[#allocation2 + $0x30] sm:$0xff] %vm19, 0.0
    %27 = vst.msk [vmem:[#allocation2 + $0x38] sm:$0xff] %vm19, 0.0
    %28 = vst.msk [vmem:[#allocation2 + $0x40] sm:$0xff] %vm19, 0.0
    %29 = vst.msk [vmem:[#allocation2 + $0x48] sm:$0xff] %vm19, 0.0
    %30 = vst.msk [vmem:[#allocation2 + $0x50] sm:$0xff] %vm19, 0.0
    %31 = vst.msk [vmem:[#allocation2 + $0x58] sm:$0xff] %vm19, 0.0
    %32 = vst.msk [vmem:[#allocation2 + $0x60] sm:$0xff] %vm19, 0.0
    %33 = vst.msk [vmem:[#allocation2 + $0x68] sm:$0xff] %vm19, 0.0
    %34 = vst.msk [vmem:[#allocation2 + $0x70] sm:$0xff] %vm19, 0.0
    %35 = vst.msk [vmem:[#allocation2 + $0x78] sm:$0xff] %vm19, 0.0
    %36 = vst.msk [vmem:[#allocation2 + $0x80] sm:$0xff] %vm19, 0.0
    %37 = vst.msk [vmem:[#allocation2 + $0x88] sm:$0xff] %vm19, 0.0
    %38 = vst.msk [vmem:[#allocation2 + $0x90] sm:$0xff] %vm19, 0.0
    %39 = vst.msk [vmem:[#allocation2 + $0x98] sm:$0xff] %vm19, 0.0
    %40 = vst.msk [vmem:[#allocation2 + $0xa0] sm:$0xff] %vm19, 0.0
    %41 = vst.msk [vmem:[#allocation2 + $0xa8] sm:$0xff] %vm19, 0.0
    %42 = vst.msk [vmem:[#allocation2 + $0xb0] sm:$0xff] %vm19, 0.0
    %43 = vst.msk [vmem:[#allocation2 + $0xb8] sm:$0xff] %vm19, 0.0
    %44 = vst.msk [vmem:[#allocation2 + $0xc0] sm:$0xff] %vm19, 0.0
    %45 = vst.msk [vmem:[#allocation2 + $0xc8] sm:$0xff] %vm19, 0.0
    %46 = vst.msk [vmem:[#allocation2 + $0xd0] sm:$0xff] %vm19, 0.0
    %47 = vst.msk [vmem:[#allocation2 + $0xd8] sm:$0xff] %vm19, 0.0
    %48 = vst.msk [vmem:[#allocation2 + $0xe0] sm:$0xff] %vm19, 0.0
    %49 = vst.msk [vmem:[#allocation2 + $0xe8] sm:$0xff] %vm19, 0.0
    %50 = vst.msk [vmem:[#allocation2 + $0xf0] sm:$0xff] %vm19, 0.0
    %51 = vst.msk [vmem:[#allocation2 + $0xf8] sm:$0xff] %vm19, 0.0
    %52 = vst.msk [vmem:[#allocation2 + $0x100] sm:$0xff] %vm19, 0.0
    %53 = vst.msk [vmem:[#allocation2 + $0x108] sm:$0xff] %vm19, 0.0
    %54 = vst.msk [vmem:[#allocation2 + $0x110] sm:$0xff] %vm19, 0.0
    %55 = vst.msk [vmem:[#allocation2 + $0x118] sm:$0xff] %vm19, 0.0
    %56 = vst.msk [vmem:[#allocation2 + $0x120] sm:$0xff] %vm19, 0.0
    %57 = vst.msk [vmem:[#allocation2 + $0x128] sm:$0xff] %vm19, 0.0
    %58 = vst.msk [vmem:[#allocation2 + $0x130] sm:$0xff] %vm19, 0.0
    %59 = vst.msk [vmem:[#allocation2 + $0x138] sm:$0xff] %vm19, 0.0
    %60 = vst.msk [vmem:[#allocation2 + $0x140] sm:$0xff] %vm19, 0.0
    %61 = vst.msk [vmem:[#allocation2 + $0x148] sm:$0xff] %vm19, 0.0
    %62 = vst.msk [vmem:[#allocation2 + $0x150] sm:$0xff] %vm19, 0.0
  $region17: #{tpu_custom_call.1} parent=0 // pred_fallthru
    _
  %v63 = vld [vmem:[#allocation2] sm:$0xff]
  %v64 = vld [vmem:[#allocation2 + $0x8] sm:$0xff]
  %v65 = vld [vmem:[#allocation2 + $0x10] sm:$0xff]
  %v66 = vld [vmem:[#allocation2 + $0x18] sm:$0xff]
  %v67 = vld [vmem:[#allocation2 + $0x20] sm:$0xff]
  %v68 = vld [vmem:[#allocation2 + $0x28] sm:$0xff]
  %v69 = vld [vmem:[#allocation2 + $0x30] sm:$0xff]
  %v70 = vld [vmem:[#allocation2 + $0x38] sm:$0xff]
  %v71 = vld [vmem:[#allocation2 + $0x40] sm:$0xff]
  %v72 = vld [vmem:[#allocation2 + $0x48] sm:$0xff]
  %v73 = vld [vmem:[#allocation2 + $0x50] sm:$0xff]
  %v74 = vld [vmem:[#allocation2 + $0x58] sm:$0xff]
  %v75 = vld [vmem:[#allocation2 + $0x60] sm:$0xff]
  %v76 = vld [vmem:[#allocation2 + $0x68] sm:$0xff]
  %v77 = vld [vmem:[#allocation2 + $0x70] sm:$0xff]
  %v78 = vld [vmem:[#allocation2 + $0x78] sm:$0xff]
  %v79 = vld [vmem:[#allocation2 + $0x80] sm:$0xff]
  %v80 = vld [vmem:[#allocation2 + $0x88] sm:$0xff]
  %v81 = vld [vmem:[#allocation2 + $0x90] sm:$0xff]
  %v82 = vld [vmem:[#allocation2 + $0x98] sm:$0xff]
  %v83 = vld [vmem:[#allocation2 + $0xa0] sm:$0xff]
  %v84 = vld [vmem:[#allocation2 + $0xa8] sm:$0xff]
  %v85 = vld [vmem:[#allocation2 + $0xb0] sm:$0xff]
  %v86 = vld [vmem:[#allocation2 + $0xb8] sm:$0xff]
  %v87 = vld [vmem:[#allocation2 + $0xc0] sm:$0xff]
  %v88 = vld [vmem:[#allocation2 + $0xc8] sm:$0xff]
  %v89 = vld [vmem:[#allocation2 + $0xd0] sm:$0xff]
  %v90 = vld [vmem:[#allocation2 + $0xd8] sm:$0xff]
  %v91 = vld [vmem:[#allocation2 + $0xe0] sm:$0xff]
  %v92 = vld [vmem:[#allocation2 + $0xe8] sm:$0xff]
  %v93 = vld [vmem:[#allocation2 + $0xf0] sm:$0xff]
  %v94 = vld [vmem:[#allocation2 + $0xf8] sm:$0xff]
  %v95 = vld [vmem:[#allocation2 + $0x100] sm:$0xff]
  %v96 = vld [vmem:[#allocation2 + $0x108] sm:$0xff]
  %v97 = vld [vmem:[#allocation2 + $0x110] sm:$0xff]
  %v98 = vld [vmem:[#allocation2 + $0x118] sm:$0xff]
  %v99 = vld [vmem:[#allocation2 + $0x120] sm:$0xff]
  %v100 = vld [vmem:[#allocation2 + $0x128] sm:$0xff]
  %v101 = vld [vmem:[#allocation2 + $0x130] sm:$0xff]
  %v102 = vld [vmem:[#allocation2 + $0x138] sm:$0xff]
  %v103 = vld [vmem:[#allocation2 + $0x140] sm:$0xff]
  %v104 = vld [vmem:[#allocation2 + $0x148] sm:$0xff]
  %v105 = vld [vmem:[#allocation2 + $0x150] sm:$0xff]
  %v106 = vld [vmem:[%s0] sm:$0xff]
  %v107 = vld [vmem:[%s0 + $0x8] sm:$0xff]
  %v108 = vld [vmem:[%s0 + $0x10] sm:$0xff]
  %v109 = vld [vmem:[%s0 + $0x18] sm:$0xff]
  %v110 = vld [vmem:[%s0 + $0x20] sm:$0xff]
  %v111 = vld [vmem:[%s0 + $0x28] sm:$0xff]
  %v112 = vld [vmem:[%s0 + $0x30] sm:$0xff]
  %v113 = vld [vmem:[%s0 + $0x38] sm:$0xff]
  %v114 = vld [vmem:[%s0 + $0x40] sm:$0xff]
  %v115 = vld [vmem:[%s0 + $0x48] sm:$0xff]
  %v116 = vld [vmem:[%s0 + $0x50] sm:$0xff]
  %v117 = vld [vmem:[%s0 + $0x58] sm:$0xff]
  %v118 = vld [vmem:[%s0 + $0x60] sm:$0xff]
  %v119 = vld [vmem:[%s0 + $0x68] sm:$0xff]
  %v120 = vld [vmem:[%s0 + $0x70] sm:$0xff]
  %v121 = vld [vmem:[%s0 + $0x78] sm:$0xff]
  %v122 = vld [vmem:[%s0 + $0x80] sm:$0xff]
  %v123 = vld [vmem:[%s0 + $0x88] sm:$0xff]
  %v124 = vld [vmem:[%s0 + $0x90] sm:$0xff]
  %v125 = vld [vmem:[%s0 + $0x98] sm:$0xff]
  %v126 = vld [vmem:[%s0 + $0xa0] sm:$0xff]
  %v127 = vld [vmem:[%s0 + $0xa8] sm:$0xff]
  %v128 = vld [vmem:[%s0 + $0xb0] sm:$0xff]
  %v129 = vld [vmem:[%s0 + $0xb8] sm:$0xff]
  %v130 = vld [vmem:[%s0 + $0xc0] sm:$0xff]
  %v131 = vld [vmem:[%s0 + $0xc8] sm:$0xff]
  %v132 = vld [vmem:[%s0 + $0xd0] sm:$0xff]
  %v133 = vld [vmem:[%s0 + $0xd8] sm:$0xff]
  %v134 = vld [vmem:[%s0 + $0xe0] sm:$0xff]
  %v135 = vld [vmem:[%s0 + $0xe8] sm:$0xff]
  %v136 = vld [vmem:[%s0 + $0xf0] sm:$0xff]
  %v137 = vld [vmem:[%s0 + $0xf8] sm:$0xff]
  %v138 = vld [vmem:[%s0 + $0x100] sm:$0xff]
  %v139 = vld [vmem:[%s0 + $0x108] sm:$0xff]
  %v140 = vld [vmem:[%s0 + $0x110] sm:$0xff]
  %v141 = vld [vmem:[%s0 + $0x118] sm:$0xff]
  %v142 = vld [vmem:[%s0 + $0x120] sm:$0xff]
  %v143 = vld [vmem:[%s0 + $0x128] sm:$0xff]
  %v144 = vld [vmem:[%s0 + $0x130] sm:$0xff]
  %v145 = vld [vmem:[%s0 + $0x138] sm:$0xff]
  %v146 = vld [vmem:[%s0 + $0x140] sm:$0xff]
  %v147 = vld [vmem:[%s0 + $0x148] sm:$0xff]
  %v148 = vld [vmem:[%s0 + $0x150] sm:$0xff]
  %v149 = vpack.c.bf16 %v107, %v106
  %v150 = vpack.c.bf16 %v109, %v108
  %v151 = vpack.c.bf16 %v111, %v110
  %v152 = vpack.c.bf16 %v113, %v112
  %v153 = vpack.c.bf16 %v115, %v114
  %v154 = vpack.c.bf16 %v117, %v116
  %v155 = vpack.c.bf16 %v119, %v118
  %v156 = vpack.c.bf16 %v121, %v120
  %v157 = vpack.c.bf16 %v123, %v122
  %v158 = vpack.c.bf16 %v125, %v124
  %v159 = vpack.c.bf16 %v127, %v126
  %v160 = vpack.c.bf16 %v129, %v128
  %v161 = vpack.c.bf16 %v131, %v130
  %v162 = vpack.c.bf16 %v133, %v132
  %v163 = vpack.c.bf16 %v135, %v134
  %v164 = vpack.c.bf16 %v137, %v136
  %v165 = vpack.c.bf16 %v139, %v138
  %v166 = vpack.c.bf16 %v141, %v140
  %v167 = vpack.c.bf16 %v143, %v142
  %v168 = vpack.c.bf16 %v145, %v144
  %v169 = vpack.c.bf16 %v147, %v146
  %v170 = vpack.c.bf16 %v148, %v148
  %v171 = vld [vmem:[%s1] sm:$0xf]
  %v172 = vld [vmem:[%s1 + $0x4] sm:$0xf]
  %v173 = vld [vmem:[%s1 + $0x8] sm:$0xf]
  %v174 = vld [vmem:[%s1 + $0xc] sm:$0xf]
  %v179 = vunpack.c.l.b16 %v171
  %v180 = vunpack.c.l.b16 %v172
  %v181 = vunpack.c.l.b16 %v173
  %v182 = vunpack.c.l.b16 %v174
  %v183 = vpack.c.b16 %v180, %v179
  %v184 = vpack.c.b16 %v182, %v181
  %vm187 = vcmask 261120
  %v189 = vsel %vm187, %v149, 0
  %v192 = vsel %vm187, %v150, 0
  %v195 = vsel %vm187, %v151, 0
  %v198 = vsel %vm187, %v152, 0
  %v201 = vsel %vm187, %v153, 0
  %v204 = vsel %vm187, %v154, 0
  %v207 = vsel %vm187, %v155, 0
  %v210 = vsel %vm187, %v156, 0
  %v213 = vsel %vm187, %v157, 0
  %v216 = vsel %vm187, %v158, 0
  %v219 = vsel %vm187, %v159, 0
  %v222 = vsel %vm187, %v160, 0
  %v225 = vsel %vm187, %v161, 0
  %v228 = vsel %vm187, %v162, 0
  %v231 = vsel %vm187, %v163, 0
  %v234 = vsel %vm187, %v164, 0
  %v237 = vsel %vm187, %v165, 0
  %v240 = vsel %vm187, %v166, 0
  %v243 = vsel %vm187, %v167, 0
  %v246 = vsel %vm187, %v168, 0
  %v249 = vsel %vm187, %v169, 0
  %v252 = vsel %vm187, %v170, 0
  %254 = vmatprep.subr.bf16.mxu0 0
  %255 = vmatpush1.bf16.msra.mxu0 0
  %256 = vmatprep.subr.bf16.mxu0 0
  %257 = vmatpush1.bf16.msra.mxu0 0
  %258 = vmatprep.subr.bf16.mxu0 0
  %259 = vmatpush1.bf16.msra.mxu0 0
  %260 = vmatprep.subr.bf16.mxu0 0
  %261 = vmatpush1.bf16.msra.mxu0 0
  %262 = vmatprep.subr.bf16.mxu0 0
  %263 = vmatpush1.bf16.msra.mxu0 0
  %264 = vmatprep.subr.bf16.mxu0 0
  %265 = vmatpush1.bf16.msra.mxu0 0
  %266 = vmatprep.subr.bf16.mxu0 0
  %267 = vmatpush1.bf16.msra.mxu0 %v184
  %268 = vmatprep.subr.bf16.mxu0 0
  %269 = vmatpush1.bf16.msra.mxu0 %v183
  %270 = vmatprep.subr.bf16.mxu0 0
  %271 = vmatpush2.bf16.msra.mxu0 0
  %272 = vmatprep.subr.bf16.mxu0 0
  %273 = vmatpush2.bf16.msra.mxu0 0
  %274 = vmatprep.subr.bf16.mxu0 0
  %275 = vmatpush2.bf16.msra.mxu0 0
  %276 = vmatprep.subr.bf16.mxu0 0
  %277 = vmatpush2.bf16.msra.mxu0 0
  %278 = vmatprep.subr.bf16.mxu0 0
  %279 = vmatpush2.bf16.msra.mxu0 0
  %280 = vmatprep.subr.bf16.mxu0 0
  %281 = vmatpush2.bf16.msra.mxu0 0
  %282 = vmatprep.subr.bf16.mxu0 0
  %283 = vmatpush2.bf16.msra.mxu0 0
  %284 = vmatprep.subr.bf16.mxu0 0
  %285 = vmatpush2.bf16.msra.mxu0 0
  %286 = vmatprep.mubr.bf16.mxu0 0
  %287 = vmatmul.mubr.bf16.gmra.mxu0 %v189
  %v288 = vpop.f32.mrf.mxu0
  %v289 = vadd.f32 0.0, %v288
  %v290 = vpop.f32.mrf.mxu0
  %v291 = vpop.f32.mrf.mxu0
  %v292 = vadd.f32 0.0, %v291
  %v293 = vpop.f32.mrf.mxu0
  %294 = vmatprep.mubr.bf16.mxu0 0
  %295 = vmatmul.mubr.bf16.gmra.mxu0 %v192
  %v296 = vpop.f32.mrf.mxu0
  %v297 = vadd.f32 0.0, %v296
  %v298 = vpop.f32.mrf.mxu0
  %v299 = vpop.f32.mrf.mxu0
  %v300 = vadd.f32 0.0, %v299
  %v301 = vpop.f32.mrf.mxu0
  %302 = vmatprep.mubr.bf16.mxu0 0
  %303 = vmatmul.mubr.bf16.gmra.mxu0 %v195
  %v304 = vpop.f32.mrf.mxu0
  %v305 = vadd.f32 0.0, %v304
  %v306 = vpop.f32.mrf.mxu0
  %v307 = vpop.f32.mrf.mxu0
  %v308 = vadd.f32 0.0, %v307
  %v309 = vpop.f32.mrf.mxu0
  %310 = vmatprep.mubr.bf16.mxu0 0
  %311 = vmatmul.mubr.bf16.gmra.mxu0 %v198
  %v312 = vpop.f32.mrf.mxu0
  %v313 = vadd.f32 0.0, %v312
  %v314 = vpop.f32.mrf.mxu0
  %v315 = vpop.f32.mrf.mxu0
  %v316 = vadd.f32 0.0, %v315
  %v317 = vpop.f32.mrf.mxu0
  %318 = vmatprep.mubr.bf16.mxu0 0
  %319 = vmatmul.mubr.bf16.gmra.mxu0 %v201
  %v320 = vpop.f32.mrf.mxu0
  %v321 = vadd.f32 0.0, %v320
  %v322 = vpop.f32.mrf.mxu0
  %v323 = vpop.f32.mrf.mxu0
  %v324 = vadd.f32 0.0, %v323
  %v325 = vpop.f32.mrf.mxu0
  %326 = vmatprep.mubr.bf16.mxu0 0
  %327 = vmatmul.mubr.bf16.gmra.mxu0 %v204
  %v328 = vpop.f32.mrf.mxu0
  %v329 = vadd.f32 0.0, %v328
  %v330 = vpop.f32.mrf.mxu0
  %v331 = vpop.f32.mrf.mxu0
  %v332 = vadd.f32 0.0, %v331
  %v333 = vpop.f32.mrf.mxu0
  %334 = vmatprep.mubr.bf16.mxu0 0
  %335 = vmatmul.mubr.bf16.gmra.mxu0 %v207
  %v336 = vpop.f32.mrf.mxu0
  %v337 = vadd.f32 0.0, %v336
  %v338 = vpop.f32.mrf.mxu0
  %v339 = vpop.f32.mrf.mxu0
  %v340 = vadd.f32 0.0, %v339
  %v341 = vpop.f32.mrf.mxu0
  %342 = vmatprep.mubr.bf16.mxu0 0
  %343 = vmatmul.mubr.bf16.gmra.mxu0 %v210
  %v344 = vpop.f32.mrf.mxu0
  %v345 = vadd.f32 0.0, %v344
  %v346 = vpop.f32.mrf.mxu0
  %v347 = vpop.f32.mrf.mxu0
  %v348 = vadd.f32 0.0, %v347
  %v349 = vpop.f32.mrf.mxu0
  %350 = vmatprep.mubr.bf16.mxu0 0
  %351 = vmatmul.mubr.bf16.gmra.mxu0 %v213
  %v352 = vpop.f32.mrf.mxu0
  %v353 = vadd.f32 0.0, %v352
  %v354 = vpop.f32.mrf.mxu0
  %v355 = vpop.f32.mrf.mxu0
  %v356 = vadd.f32 0.0, %v355
  %v357 = vpop.f32.mrf.mxu0
  %358 = vmatprep.mubr.bf16.mxu0 0
  %359 = vmatmul.mubr.bf16.gmra.mxu0 %v216
  %v360 = vpop.f32.mrf.mxu0
  %v361 = vadd.f32 0.0, %v360
  %v362 = vpop.f32.mrf.mxu0
  %v363 = vpop.f32.mrf.mxu0
  %v364 = vadd.f32 0.0, %v363
  %v365 = vpop.f32.mrf.mxu0
  %366 = vmatprep.mubr.bf16.mxu0 0
  %367 = vmatmul.mubr.bf16.gmra.mxu0 %v219
  %v368 = vpop.f32.mrf.mxu0
  %v369 = vadd.f32 0.0, %v368
  %v370 = vpop.f32.mrf.mxu0
  %v371 = vpop.f32.mrf.mxu0
  %v372 = vadd.f32 0.0, %v371
  %v373 = vpop.f32.mrf.mxu0
  %374 = vmatprep.mubr.bf16.mxu0 0
  %375 = vmatmul.mubr.bf16.gmra.mxu0 %v222
  %v376 = vpop.f32.mrf.mxu0
  %v377 = vadd.f32 0.0, %v376
  %v378 = vpop.f32.mrf.mxu0
  %v379 = vpop.f32.mrf.mxu0
  %v380 = vadd.f32 0.0, %v379
  %v381 = vpop.f32.mrf.mxu0
  %382 = vmatprep.mubr.bf16.mxu0 0
  %383 = vmatmul.mubr.bf16.gmra.mxu0 %v225
  %v384 = vpop.f32.mrf.mxu0
  %v385 = vadd.f32 0.0, %v384
  %v386 = vpop.f32.mrf.mxu0
  %v387 = vpop.f32.mrf.mxu0
  %v388 = vadd.f32 0.0, %v387
  %v389 = vpop.f32.mrf.mxu0
  %390 = vmatprep.mubr.bf16.mxu0 0
  %391 = vmatmul.mubr.bf16.gmra.mxu0 %v228
  %v392 = vpop.f32.mrf.mxu0
  %v393 = vadd.f32 0.0, %v392
  %v394 = vpop.f32.mrf.mxu0
  %v395 = vpop.f32.mrf.mxu0
  %v396 = vadd.f32 0.0, %v395
  %v397 = vpop.f32.mrf.mxu0
  %398 = vmatprep.mubr.bf16.mxu0 0
  %399 = vmatmul.mubr.bf16.gmra.mxu0 %v231
  %v400 = vpop.f32.mrf.mxu0
  %v401 = vadd.f32 0.0, %v400
  %v402 = vpop.f32.mrf.mxu0
  %v403 = vpop.f32.mrf.mxu0
  %v404 = vadd.f32 0.0, %v403
  %v405 = vpop.f32.mrf.mxu0
  %406 = vmatprep.mubr.bf16.mxu0 0
  %407 = vmatmul.mubr.bf16.gmra.mxu0 %v234
  %v408 = vpop.f32.mrf.mxu0
  %v409 = vadd.f32 0.0, %v408
  %v410 = vpop.f32.mrf.mxu0
  %v411 = vpop.f32.mrf.mxu0
  %v412 = vadd.f32 0.0, %v411
  %v413 = vpop.f32.mrf.mxu0
  %414 = vmatprep.mubr.bf16.mxu0 0
  %415 = vmatmul.mubr.bf16.gmra.mxu0 %v237
  %v416 = vpop.f32.mrf.mxu0
  %v417 = vadd.f32 0.0, %v416
  %v418 = vpop.f32.mrf.mxu0
  %v419 = vpop.f32.mrf.mxu0
  %v420 = vadd.f32 0.0, %v419
  %v421 = vpop.f32.mrf.mxu0
  %422 = vmatprep.mubr.bf16.mxu0 0
  %423 = vmatmul.mubr.bf16.gmra.mxu0 %v240
  %v424 = vpop.f32.mrf.mxu0
  %v425 = vadd.f32 0.0, %v424
  %v426 = vpop.f32.mrf.mxu0
  %v427 = vpop.f32.mrf.mxu0
  %v428 = vadd.f32 0.0, %v427
  %v429 = vpop.f32.mrf.mxu0
  %430 = vmatprep.mubr.bf16.mxu0 0
  %431 = vmatmul.mubr.bf16.gmra.mxu0 %v243
  %v432 = vpop.f32.mrf.mxu0
  %v433 = vadd.f32 0.0, %v432
  %v434 = vpop.f32.mrf.mxu0
  %v435 = vpop.f32.mrf.mxu0
  %v436 = vadd.f32 0.0, %v435
  %v437 = vpop.f32.mrf.mxu0
  %438 = vmatprep.mubr.bf16.mxu0 0
  %439 = vmatmul.mubr.bf16.gmra.mxu0 %v246
  %v440 = vpop.f32.mrf.mxu0
  %v441 = vadd.f32 0.0, %v440
  %v442 = vpop.f32.mrf.mxu0
  %v443 = vpop.f32.mrf.mxu0
  %v444 = vadd.f32 0.0, %v443
  %v445 = vpop.f32.mrf.mxu0
  %446 = vmatprep.mubr.bf16.mxu0 0
  %447 = vmatmul.mubr.bf16.gmra.mxu0 %v249
  %v448 = vpop.f32.mrf.mxu0
  %v449 = vadd.f32 0.0, %v448
  %v450 = vpop.f32.mrf.mxu0
  %v451 = vpop.f32.mrf.mxu0
  %v452 = vadd.f32 0.0, %v451
  %v453 = vpop.f32.mrf.mxu0
  %454 = vmatprep.mubr.bf16.mxu0 0
  %455 = vmatmul.mubr.bf16.gmra.mxu0 %v252
  %v456 = vpop.f32.mrf.mxu0
  %v457 = vadd.f32 0.0, %v456
  %v458 = vpop.f32.mrf.mxu0
  %v459 = vpop.f32.mrf.mxu0
  %v460 = vpop.f32.mrf.mxu0
  %461 = vdwg.mxu0
  %v462 = vadd.f32 %v63, %v289
  %v463 = vadd.f32 %v64, %v292
  %v464 = vadd.f32 %v65, %v297
  %v465 = vadd.f32 %v66, %v300
  %v466 = vadd.f32 %v67, %v305
  %v467 = vadd.f32 %v68, %v308
  %v468 = vadd.f32 %v69, %v313
  %v469 = vadd.f32 %v70, %v316
  %v470 = vadd.f32 %v71, %v321
  %v471 = vadd.f32 %v72, %v324
  %v472 = vadd.f32 %v73, %v329
  %v473 = vadd.f32 %v74, %v332
  %v474 = vadd.f32 %v75, %v337
  %v475 = vadd.f32 %v76, %v340
  %v476 = vadd.f32 %v77, %v345
  %v477 = vadd.f32 %v78, %v348
  %v478 = vadd.f32 %v79, %v353
  %v479 = vadd.f32 %v80, %v356
  %v480 = vadd.f32 %v81, %v361
  %v481 = vadd.f32 %v82, %v364
  %v482 = vadd.f32 %v83, %v369
  %v483 = vadd.f32 %v84, %v372
  %v484 = vadd.f32 %v85, %v377
  %v485 = vadd.f32 %v86, %v380
  %v486 = vadd.f32 %v87, %v385
  %v487 = vadd.f32 %v88, %v388
  %v488 = vadd.f32 %v89, %v393
  %v489 = vadd.f32 %v90, %v396
  %v490 = vadd.f32 %v91, %v401
  %v491 = vadd.f32 %v92, %v404
  %v492 = vadd.f32 %v93, %v409
  %v493 = vadd.f32 %v94, %v412
  %v494 = vadd.f32 %v95, %v417
  %v495 = vadd.f32 %v96, %v420
  %v496 = vadd.f32 %v97, %v425
  %v497 = vadd.f32 %v98, %v428
  %v498 = vadd.f32 %v99, %v433
  %v499 = vadd.f32 %v100, %v436
  %v500 = vadd.f32 %v101, %v441
  %v501 = vadd.f32 %v102, %v444
  %v502 = vadd.f32 %v103, %v449
  %v503 = vadd.f32 %v104, %v452
  %v504 = vadd.f32 %v105, %v457
  %vm505 = vcmask 785408
  %506 = vst.msk [vmem:[#allocation2] sm:$0xff] %vm505, %v462
  %507 = vst.msk [vmem:[#allocation2 + $0x8] sm:$0xff] %vm505, %v463
  %508 = vst.msk [vmem:[#allocation2 + $0x10] sm:$0xff] %vm505, %v464
  %509 = vst.msk [vmem:[#allocation2 + $0x18] sm:$0xff] %vm505, %v465
  %510 = vst.msk [vmem:[#allocation2 + $0x20] sm:$0xff] %vm505, %v466
  %511 = vst.msk [vmem:[#allocation2 + $0x28] sm:$0xff] %vm505, %v467
  %512 = vst.msk [vmem:[#allocation2 + $0x30] sm:$0xff] %vm505, %v468
  %513 = vst.msk [vmem:[#allocation2 + $0x38] sm:$0xff] %vm505, %v469
  %514 = vst.msk [vmem:[#allocation2 + $0x40] sm:$0xff] %vm505, %v470
  %515 = vst.msk [vmem:[#allocation2 + $0x48] sm:$0xff] %vm505, %v471
  %516 = vst.msk [vmem:[#allocation2 + $0x50] sm:$0xff] %vm505, %v472
  %517 = vst.msk [vmem:[#allocation2 + $0x58] sm:$0xff] %vm505, %v473
  %518 = vst.msk [vmem:[#allocation2 + $0x60] sm:$0xff] %vm505, %v474
  %519 = vst.msk [vmem:[#allocation2 + $0x68] sm:$0xff] %vm505, %v475
  %520 = vst.msk [vmem:[#allocation2 + $0x70] sm:$0xff] %vm505, %v476
  %521 = vst.msk [vmem:[#allocation2 + $0x78] sm:$0xff] %vm505, %v477
  %522 = vst.msk [vmem:[#allocation2 + $0x80] sm:$0xff] %vm505, %v478
  %523 = vst.msk [vmem:[#allocation2 + $0x88] sm:$0xff] %vm505, %v479
  %524 = vst.msk [vmem:[#allocation2 + $0x90] sm:$0xff] %vm505, %v480
  %525 = vst.msk [vmem:[#allocation2 + $0x98] sm:$0xff] %vm505, %v481
  %526 = vst.msk [vmem:[#allocation2 + $0xa0] sm:$0xff] %vm505, %v482
  %527 = vst.msk [vmem:[#allocation2 + $0xa8] sm:$0xff] %vm505, %v483
  %528 = vst.msk [vmem:[#allocation2 + $0xb0] sm:$0xff] %vm505, %v484
  %529 = vst.msk [vmem:[#allocation2 + $0xb8] sm:$0xff] %vm505, %v485
  %530 = vst.msk [vmem:[#allocation2 + $0xc0] sm:$0xff] %vm505, %v486
  %531 = vst.msk [vmem:[#allocation2 + $0xc8] sm:$0xff] %vm505, %v487
  %532 = vst.msk [vmem:[#allocation2 + $0xd0] sm:$0xff] %vm505, %v488
  %533 = vst.msk [vmem:[#allocation2 + $0xd8] sm:$0xff] %vm505, %v489
  %534 = vst.msk [vmem:[#allocation2 + $0xe0] sm:$0xff] %vm505, %v490
  %535 = vst.msk [vmem:[#allocation2 + $0xe8] sm:$0xff] %vm505, %v491
  %536 = vst.msk [vmem:[#allocation2 + $0xf0] sm:$0xff] %vm505, %v492
  %537 = vst.msk [vmem:[#allocation2 + $0xf8] sm:$0xff] %vm505, %v493
  %538 = vst.msk [vmem:[#allocation2 + $0x100] sm:$0xff] %vm505, %v494
  %539 = vst.msk [vmem:[#allocation2 + $0x108] sm:$0xff] %vm505, %v495
  %540 = vst.msk [vmem:[#allocation2 + $0x110] sm:$0xff] %vm505, %v496
  %541 = vst.msk [vmem:[#allocation2 + $0x118] sm:$0xff] %vm505, %v497
  %542 = vst.msk [vmem:[#allocation2 + $0x120] sm:$0xff] %vm505, %v498
  %543 = vst.msk [vmem:[#allocation2 + $0x128] sm:$0xff] %vm505, %v499
  %544 = vst.msk [vmem:[#allocation2 + $0x130] sm:$0xff] %vm505, %v500
  %545 = vst.msk [vmem:[#allocation2 + $0x138] sm:$0xff] %vm505, %v501
  %546 = vst.msk [vmem:[#allocation2 + $0x140] sm:$0xff] %vm505, %v502
  %547 = vst.msk [vmem:[#allocation2 + $0x148] sm:$0xff] %vm505, %v503
  %548 = vst.msk [vmem:[#allocation2 + $0x150] sm:$0xff] %vm505, %v504
  // Predicated region
  $region18: #{tpu_custom_call.1} parent=0 // pred_check
    %p549 = pneg %p15
  $region19: #{tpu_custom_call.1} parent=0 // pred_check_branch
    %551 = sbr.rel (%p549) target = $region21
  $region20: #{tpu_custom_call.1} parent=0 // pred_region
    %v552 = vld [vmem:[#allocation2] sm:$0xff]
    %v553 = vld [vmem:[#allocation2 + $0x8] sm:$0xff]
    %v554 = vld [vmem:[#allocation2 + $0x10] sm:$0xff]
    %v555 = vld [vmem:[#allocation2 + $0x18] sm:$0xff]
    %v556 = vld [vmem:[#allocation2 + $0x20] sm:$0xff]
    %v557 = vld [vmem:[#allocation2 + $0x28] sm:$0xff]
    %v558 = vld [vmem:[#allocation2 + $0x30] sm:$0xff]
    %v559 = vld [vmem:[#allocation2 + $0x38] sm:$0xff]
    %v560 = vld [vmem:[#allocation2 + $0x40] sm:$0xff]
    %v561 = vld [vmem:[#allocation2 + $0x48] sm:$0xff]
    %v562 = vld [vmem:[#allocation2 + $0x50] sm:$0xff]
    %v563 = vld [vmem:[#allocation2 + $0x58] sm:$0xff]
    %v564 = vld [vmem:[#allocation2 + $0x60] sm:$0xff]
    %v565 = vld [vmem:[#allocation2 + $0x68] sm:$0xff]
    %v566 = vld [vmem:[#allocation2 + $0x70] sm:$0xff]
    %v567 = vld [vmem:[#allocation2 + $0x78] sm:$0xff]
    %v568 = vld [vmem:[#allocation2 + $0x80] sm:$0xff]
    %v569 = vld [vmem:[#allocation2 + $0x88] sm:$0xff]
    %v570 = vld [vmem:[#allocation2 + $0x90] sm:$0xff]
    %v571 = vld [vmem:[#allocation2 + $0x98] sm:$0xff]
    %v572 = vld [vmem:[#allocation2 + $0xa0] sm:$0xff]
    %v573 = vld [vmem:[#allocation2 + $0xa8] sm:$0xff]
    %v574 = vld [vmem:[#allocation2 + $0xb0] sm:$0xff]
    %v575 = vld [vmem:[#allocation2 + $0xb8] sm:$0xff]
    %v576 = vld [vmem:[#allocation2 + $0xc0] sm:$0xff]
    %v577 = vld [vmem:[#allocation2 + $0xc8] sm:$0xff]
    %v578 = vld [vmem:[#allocation2 + $0xd0] sm:$0xff]
    %v579 = vld [vmem:[#allocation2 + $0xd8] sm:$0xff]
    %v580 = vld [vmem:[#allocation2 + $0xe0] sm:$0xff]
    %v581 = vld [vmem:[#allocation2 + $0xe8] sm:$0xff]
    %v582 = vld [vmem:[#allocation2 + $0xf0] sm:$0xff]
    %v583 = vld [vmem:[#allocation2 + $0xf8] sm:$0xff]
    %v584 = vld [vmem:[#allocation2 + $0x100] sm:$0xff]
    %v585 = vld [vmem:[#allocation2 + $0x108] sm:$0xff]
    %v586 = vld [vmem:[#allocation2 + $0x110] sm:$0xff]
    %v587 = vld [vmem:[#allocation2 + $0x118] sm:$0xff]
    %v588 = vld [vmem:[#allocation2 + $0x120] sm:$0xff]
    %v589 = vld [vmem:[#allocation2 + $0x128] sm:$0xff]
    %v590 = vld [vmem:[#allocation2 + $0x130] sm:$0xff]
    %v591 = vld [vmem:[#allocation2 + $0x138] sm:$0xff]
    %v592 = vld [vmem:[#allocation2 + $0x140] sm:$0xff]
    %v593 = vld [vmem:[#allocation2 + $0x148] sm:$0xff]
    %v594 = vld [vmem:[#allocation2 + $0x150] sm:$0xff]
    %v595 = vld [vmem:[%s2] sm:$0x1]
    %v597 = vlaneseq
    %v598 = vshrl.u32 %v597, 7
    %v599 = vsub.s32 0, %v598
    %v600 = vrot.slane %v595, %v599
    %v602 = vadd.f32 %v552, %v600
    %v603 = vadd.f32 %v553, %v600
    %v604 = vadd.f32 %v554, %v600
    %v605 = vadd.f32 %v555, %v600
    %v606 = vadd.f32 %v556, %v600
    %v607 = vadd.f32 %v557, %v600
    %v608 = vadd.f32 %v558, %v600
    %v609 = vadd.f32 %v559, %v600
    %v610 = vadd.f32 %v560, %v600
    %v611 = vadd.f32 %v561, %v600
    %v612 = vadd.f32 %v562, %v600
    %v613 = vadd.f32 %v563, %v600
    %v614 = vadd.f32 %v564, %v600
    %v615 = vadd.f32 %v565, %v600
    %v616 = vadd.f32 %v566, %v600
    %v617 = vadd.f32 %v567, %v600
    %v618 = vadd.f32 %v568, %v600
    %v619 = vadd.f32 %v569, %v600
    %v620 = vadd.f32 %v570, %v600
    %v621 = vadd.f32 %v571, %v600
    %v622 = vadd.f32 %v572, %v600
    %v623 = vadd.f32 %v573, %v600
    %v624 = vadd.f32 %v574, %v600
    %v625 = vadd.f32 %v575, %v600
    %v626 = vadd.f32 %v576, %v600
    %v627 = vadd.f32 %v577, %v600
    %v628 = vadd.f32 %v578, %v600
    %v629 = vadd.f32 %v579, %v600
    %v630 = vadd.f32 %v580, %v600
    %v631 = vadd.f32 %v581, %v600
    %v632 = vadd.f32 %v582, %v600
    %v633 = vadd.f32 %v583, %v600
    %v634 = vadd.f32 %v584, %v600
    %v635 = vadd.f32 %v585, %v600
    %v636 = vadd.f32 %v586, %v600
    %v637 = vadd.f32 %v587, %v600
    %v638 = vadd.f32 %v588, %v600
    %v639 = vadd.f32 %v589, %v600
    %v640 = vadd.f32 %v590, %v600
    %v641 = vadd.f32 %v591, %v600
    %v642 = vadd.f32 %v592, %v600
    %v643 = vadd.f32 %v593, %v600
    %v644 = vadd.f32 %v594, %v600
    %v645 = vpack.c.bf16 %v603, %v602
    %v646 = vpack.c.bf16 %v605, %v604
    %v647 = vpack.c.bf16 %v607, %v606
    %v648 = vpack.c.bf16 %v609, %v608
    %v649 = vpack.c.bf16 %v611, %v610
    %v650 = vpack.c.bf16 %v613, %v612
    %v651 = vpack.c.bf16 %v615, %v614
    %v652 = vpack.c.bf16 %v617, %v616
    %v653 = vpack.c.bf16 %v619, %v618
    %v654 = vpack.c.bf16 %v621, %v620
    %v655 = vpack.c.bf16 %v623, %v622
    %v656 = vpack.c.bf16 %v625, %v624
    %v657 = vpack.c.bf16 %v627, %v626
    %v658 = vpack.c.bf16 %v629, %v628
    %v659 = vpack.c.bf16 %v631, %v630
    %v660 = vpack.c.bf16 %v633, %v632
    %v661 = vpack.c.bf16 %v635, %v634
    %v662 = vpack.c.bf16 %v637, %v636
    %v663 = vpack.c.bf16 %v639, %v638
    %v664 = vpack.c.bf16 %v641, %v640
    %v665 = vpack.c.bf16 %v643, %v642
    %v666 = vpack.c.bf16 %v644, %v644
    %v689 = vunpack.c.l.b16 %v645
    %v690 = vunpack.c.h.b16 %v645
    %v691 = vunpack.c.l.b16 %v646
    %v692 = vunpack.c.h.b16 %v646
    %v693 = vunpack.c.l.b16 %v647
    %v694 = vunpack.c.h.b16 %v647
    %v695 = vunpack.c.l.b16 %v648
    %v696 = vunpack.c.h.b16 %v648
    %v697 = vunpack.c.l.b16 %v649
    %v698 = vunpack.c.h.b16 %v649
    %v699 = vunpack.c.l.b16 %v650
    %v700 = vunpack.c.h.b16 %v650
    %v701 = vunpack.c.l.b16 %v651
    %v702 = vunpack.c.h.b16 %v651
    %v703 = vunpack.c.l.b16 %v652
    %v704 = vunpack.c.h.b16 %v652
    %v705 = vunpack.c.l.b16 %v653
    %v706 = vunpack.c.h.b16 %v653
    %v707 = vunpack.c.l.b16 %v654
    %v708 = vunpack.c.h.b16 %v654
    %v709 = vunpack.c.l.b16 %v655
    %v710 = vunpack.c.h.b16 %v655
    %v711 = vunpack.c.l.b16 %v656
    %v712 = vunpack.c.h.b16 %v656
    %v713 = vunpack.c.l.b16 %v657
    %v714 = vunpack.c.h.b16 %v657
    %v715 = vunpack.c.l.b16 %v658
    %v716 = vunpack.c.h.b16 %v658
    %v717 = vunpack.c.l.b16 %v659
    %v718 = vunpack.c.h.b16 %v659
    %v719 = vunpack.c.l.b16 %v660
    %v720 = vunpack.c.h.b16 %v660
    %v721 = vunpack.c.l.b16 %v661
    %v722 = vunpack.c.h.b16 %v661
    %v723 = vunpack.c.l.b16 %v662
    %v724 = vunpack.c.h.b16 %v662
    %v725 = vunpack.c.l.b16 %v663
    %v726 = vunpack.c.h.b16 %v663
    %v727 = vunpack.c.l.b16 %v664
    %v728 = vunpack.c.h.b16 %v664
    %v729 = vunpack.c.l.b16 %v665
    %v730 = vunpack.c.h.b16 %v665
    %v731 = vunpack.c.l.b16 %v666
    %v732 = vpack.c.b16 %v689, %v689
    %v733 = vpack.c.b16 %v690, %v690
    %v734 = vpack.c.b16 %v691, %v691
    %v735 = vpack.c.b16 %v692, %v692
    %v736 = vpack.c.b16 %v693, %v693
    %v737 = vpack.c.b16 %v694, %v694
    %v738 = vpack.c.b16 %v695, %v695
    %v739 = vpack.c.b16 %v696, %v696
    %v740 = vpack.c.b16 %v697, %v697
    %v741 = vpack.c.b16 %v698, %v698
    %v742 = vpack.c.b16 %v699, %v699
    %v743 = vpack.c.b16 %v700, %v700
    %v744 = vpack.c.b16 %v701, %v701
    %v745 = vpack.c.b16 %v702, %v702
    %v746 = vpack.c.b16 %v703, %v703
    %v747 = vpack.c.b16 %v704, %v704
    %v748 = vpack.c.b16 %v705, %v705
    %v749 = vpack.c.b16 %v706, %v706
    %v750 = vpack.c.b16 %v707, %v707
    %v751 = vpack.c.b16 %v708, %v708
    %v752 = vpack.c.b16 %v709, %v709
    %v753 = vpack.c.b16 %v710, %v710
    %v754 = vpack.c.b16 %v711, %v711
    %v755 = vpack.c.b16 %v712, %v712
    %v756 = vpack.c.b16 %v713, %v713
    %v757 = vpack.c.b16 %v714, %v714
    %v758 = vpack.c.b16 %v715, %v715
    %v759 = vpack.c.b16 %v716, %v716
    %v760 = vpack.c.b16 %v717, %v717
    %v761 = vpack.c.b16 %v718, %v718
    %v762 = vpack.c.b16 %v719, %v719
    %v763 = vpack.c.b16 %v720, %v720
    %v764 = vpack.c.b16 %v721, %v721
    %v765 = vpack.c.b16 %v722, %v722
    %v766 = vpack.c.b16 %v723, %v723
    %v767 = vpack.c.b16 %v724, %v724
    %v768 = vpack.c.b16 %v725, %v725
    %v769 = vpack.c.b16 %v726, %v726
    %v770 = vpack.c.b16 %v727, %v727
    %v771 = vpack.c.b16 %v728, %v728
    %v772 = vpack.c.b16 %v729, %v729
    %v773 = vpack.c.b16 %v730, %v730
    %v774 = vpack.c.b16 %v731, %v731
    %vm818 = vcmask 781312
    %819 = vst.msk [vmem:[%s3] sm:$0xf] %vm818, %v732
    %820 = vst.msk [vmem:[%s3 + $0x4] sm:$0xf] %vm818, %v733
    %821 = vst.msk [vmem:[%s3 + $0x8] sm:$0xf] %vm818, %v734
    %822 = vst.msk [vmem:[%s3 + $0xc] sm:$0xf] %vm818, %v735
    %823 = vst.msk [vmem:[%s3 + $0x10] sm:$0xf] %vm818, %v736
    %824 = vst.msk [vmem:[%s3 + $0x14] sm:$0xf] %vm818, %v737
    %825 = vst.msk [vmem:[%s3 + $0x18] sm:$0xf] %vm818, %v738
    %826 = vst.msk [vmem:[%s3 + $0x1c] sm:$0xf] %vm818, %v739
    %827 = vst.msk [vmem:[%s3 + $0x20] sm:$0xf] %vm818, %v740
    %828 = vst.msk [vmem:[%s3 + $0x24] sm:$0xf] %vm818, %v741
    %829 = vst.msk [vmem:[%s3 + $0x28] sm:$0xf] %vm818, %v742
    %830 = vst.msk [vmem:[%s3 + $0x2c] sm:$0xf] %vm818, %v743
    %831 = vst.msk [vmem:[%s3 + $0x30] sm:$0xf] %vm818, %v744
    %832 = vst.msk [vmem:[%s3 + $0x34] sm:$0xf] %vm818, %v745
    %833 = vst.msk [vmem:[%s3 + $0x38] sm:$0xf] %vm818, %v746
    %834 = vst.msk [vmem:[%s3 + $0x3c] sm:$0xf] %vm818, %v747
    %835 = vst.msk [vmem:[%s3 + $0x40] sm:$0xf] %vm818, %v748
    %836 = vst.msk [vmem:[%s3 + $0x44] sm:$0xf] %vm818, %v749
    %837 = vst.msk [vmem:[%s3 + $0x48] sm:$0xf] %vm818, %v750
    %838 = vst.msk [vmem:[%s3 + $0x4c] sm:$0xf] %vm818, %v751
    %839 = vst.msk [vmem:[%s3 + $0x50] sm:$0xf] %vm818, %v752
    %840 = vst.msk [vmem:[%s3 + $0x54] sm:$0xf] %vm818, %v753
    %841 = vst.msk [vmem:[%s3 + $0x58] sm:$0xf] %vm818, %v754
    %842 = vst.msk [vmem:[%s3 + $0x5c] sm:$0xf] %vm818, %v755
    %843 = vst.msk [vmem:[%s3 + $0x60] sm:$0xf] %vm818, %v756
    %844 = vst.msk [vmem:[%s3 + $0x64] sm:$0xf] %vm818, %v757
    %845 = vst.msk [vmem:[%s3 + $0x68] sm:$0xf] %vm818, %v758
    %846 = vst.msk [vmem:[%s3 + $0x6c] sm:$0xf] %vm818, %v759
    %847 = vst.msk [vmem:[%s3 + $0x70] sm:$0xf] %vm818, %v760
    %848 = vst.msk [vmem:[%s3 + $0x74] sm:$0xf] %vm818, %v761
    %849 = vst.msk [vmem:[%s3 + $0x78] sm:$0xf] %vm818, %v762
    %850 = vst.msk [vmem:[%s3 + $0x7c] sm:$0xf] %vm818, %v763
    %851 = vst.msk [vmem:[%s3 + $0x80] sm:$0xf] %vm818, %v764
    %852 = vst.msk [vmem:[%s3 + $0x84] sm:$0xf] %vm818, %v765
    %853 = vst.msk [vmem:[%s3 + $0x88] sm:$0xf] %vm818, %v766
    %854 = vst.msk [vmem:[%s3 + $0x8c] sm:$0xf] %vm818, %v767
    %855 = vst.msk [vmem:[%s3 + $0x90] sm:$0xf] %vm818, %v768
    %856 = vst.msk [vmem:[%s3 + $0x94] sm:$0xf] %vm818, %v769
    %857 = vst.msk [vmem:[%s3 + $0x98] sm:$0xf] %vm818, %v770
    %858 = vst.msk [vmem:[%s3 + $0x9c] sm:$0xf] %vm818, %v771
    %859 = vst.msk [vmem:[%s3 + $0xa0] sm:$0xf] %vm818, %v772
    %860 = vst.msk [vmem:[%s3 + $0xa4] sm:$0xf] %vm818, %v773
    %861 = vst.msk [vmem:[%s3 + $0xa8] sm:$0xf] %vm818, %v774
  $region21: #{tpu_custom_call.1} parent=0 // pred_fallthru
    _
  // Predicated region
  $region22: #{tpu_custom_call.1} parent=0 // pred_check
    _
  $region23: #{tpu_custom_call.1} parent=0 // pred_check_branch
    %863 = sbr.rel (0) target = $region25
  $region24: #{tpu_custom_call.1} parent=0 // pred_region
    _
  $region25: #{tpu_custom_call.1} parent=0 // pred_fallthru
    _
  // Predicated region
  $region26: #{tpu_custom_call.1} parent=0 // pred_check
    _
  $region27: #{tpu_custom_call.1} parent=0 // pred_check_branch
    %865 = sbr.rel (0) target = $region29
  $region28: #{tpu_custom_call.1} parent=0 // pred_region
    _
  $region29: #{tpu_custom_call.1} parent=0 // pred_fallthru
    _

</llo_original>
